<compile_context>
chip_gen: v7x
topology: tpu7x:2x2x1
jax: 0.10.0
libtpu: 0.0.40
codegen_flags: <defaults>
</compile_context>

<pallas_src>
import functools

import jax
import jax.numpy as jnp
from jax.experimental import pallas as pl
from jax.experimental.pallas import tpu as pltpu


# ---------------------------------------------------------------------------
# Fused GAT kernel: one batch element per grid step, all heads inside.
# ---------------------------------------------------------------------------
def _gat_kernel(x_ref, w_ref, alT_ref, ar_ref, adj_ref, o_ref, *,
                num_heads, out_feats, negative_slope):
    # x_ref   : (1, N, Din)    node features for one batch element
    # w_ref   : (Din, H*Dout)  fc weight (in x out layout, no bias)
    # alT_ref : (H, H*Dout)    block-diagonal attn_l (row h holds attn_l[h])
    # ar_ref  : (H*Dout, H)    block-diagonal attn_r
    # adj_ref : (N, N)         adj[v, u] = 1.0 iff edge u -> v
    # o_ref   : (1, N, H*Dout)
    x = x_ref[0]                                                    # (N, Din)

    # fc projection: one MXU matmul, result stays resident.
    ft = jnp.dot(x, w_ref[...], preferred_element_type=jnp.float32)  # (N, HD)

    # el^T[h, u] = sum_d attn_l[h, d] * ft[u, h*Dout + d]  -> (H, N)
    elT = jax.lax.dot_general(
        alT_ref[...], ft, (((1,), (1,)), ((), ())),
        preferred_element_type=jnp.float32)
    # er[v, h]  = sum_d attn_r[h, d] * ft[v, h*Dout + d]   -> (N, H)
    er = jnp.dot(ft, ar_ref[...], preferred_element_type=jnp.float32)

    edge = adj_ref[...] > 0.0                                        # (N, N)
    mask_bias = jnp.where(edge, 0.0, -1e30)                          # hoisted

    head_outs = []
    for h in range(num_heads):                     # small H, statically unrolled
        # e[v, u] = LeakyReLU(el[u] + er[v])   (static slices, no relayout)
        e = er[:, h:h + 1] + elT[h:h + 1, :]                         # (N, N)
        e = jnp.where(e >= 0.0, e, negative_slope * e)
        # edge-softmax over incoming edges (axis=1 == source node u), masked.
        e = e + mask_bias
        m = jnp.max(e, axis=1, keepdims=True)                        # (N, 1)
        p = jnp.where(edge, jnp.exp(e - m), 0.0)                     # (N, N)
        denom = jnp.sum(p, axis=1, keepdims=True)
        inv = pl.reciprocal(jnp.where(denom == 0.0, 1.0, denom), approx=True)
        a = p * inv                                                  # (N, N)
        # rst[v] = sum_u a[v, u] * (W h_u)   (per head), MXU matmul.
        ft_h = ft[:, h * out_feats:(h + 1) * out_feats]              # (N, Dout)
        head_outs.append(
            jnp.dot(a, ft_h, preferred_element_type=jnp.float32))

    # Single lane-dense (N, H*Dout) store instead of H masked partial stores.
    o_ref[0] = jnp.concatenate(head_outs, axis=-1)


# ---------------------------------------------------------------------------
# Wrapper: builds block-diagonal attention matrices, launches the fused kernel.
# ---------------------------------------------------------------------------
def batch_gat_conv(feat, adj, w, attn_l, attn_r, *, negative_slope=0.2):
    """feat: (N, B, Din) f32; adj: (N, N) f32 mask (adj[v,u]=1 iff edge u->v);
    w: (Din, H*Dout); attn_l/attn_r: (H, Dout).  Returns (N, B, H, Dout)."""
    N, B, Din = feat.shape
    H, Dout = attn_l.shape
    HD = H * Dout

    x_bnd = jnp.transpose(feat, (1, 0, 2))                 # (B, N, Din)

    # Block-diagonal forms so el/er become plain MXU matmuls in the kernel.
    eye_h = jnp.eye(H, dtype=w.dtype)
    a_lT = (attn_l[None, :, :] * eye_h[:, :, None]).reshape(H, HD)        # (H, HD)
    a_r = (attn_r[:, None, :] * eye_h[:, :, None]).transpose(0, 2, 1)
    a_r = a_r.reshape(HD, H)                                              # (HD, H)

    kern = functools.partial(_gat_kernel, num_heads=H, out_feats=Dout,
                             negative_slope=negative_slope)

    out = pl.pallas_call(
        kern,
        out_shape=jax.ShapeDtypeStruct((B, N, HD), jnp.float32),
        grid=(B,),
        in_specs=[
            pl.BlockSpec((1, N, Din), lambda b: (b, 0, 0)),
            pl.BlockSpec((Din, HD), lambda b: (0, 0)),
            pl.BlockSpec((H, HD), lambda b: (0, 0)),
            pl.BlockSpec((HD, H), lambda b: (0, 0)),
            pl.BlockSpec((N, N), lambda b: (0, 0)),
        ],
        out_specs=pl.BlockSpec((1, N, HD), lambda b: (b, 0, 0)),
        compiler_params=pltpu.CompilerParams(dimension_semantics=("parallel",)),
    )(x_bnd, w, a_lT, a_r, adj)

    # (B, N, H*Dout) -> (N, B, H, Dout)   (matches the PyTorch return layout)
    return jnp.transpose(out, (1, 0, 2)).reshape(N, B, H, Dout)


# ---------------------------------------------------------------------------
# Pure-JAX reference (dense-adjacency formulation of the module's forward)
# ---------------------------------------------------------------------------
def gat_ref(feat, adj, w, attn_l, attn_r, *, negative_slope=0.2):
    N, B, Din = feat.shape
    H, Dout = attn_l.shape
    ft = (feat.reshape(N * B, Din) @ w).reshape(N, B, H, Dout)
    el = (ft * attn_l[None, None]).sum(-1)                 # (N, B, H)
    er = (ft * attn_r[None, None]).sum(-1)                 # (N, B, H)
    e = el[None, :, :, :] + er[:, None, :, :]              # (V, U, B, H)
    e = jnp.where(e >= 0.0, e, negative_slope * e)
    mask = (adj > 0.0)[:, :, None, None]
    e = jnp.where(mask, e, -1e30)
    m = jnp.max(e, axis=1, keepdims=True)
    p = jnp.where(mask, jnp.exp(e - m), 0.0)
    denom = jnp.sum(p, axis=1, keepdims=True)
    a = p / jnp.where(denom == 0.0, 1.0, denom)
    return jnp.einsum("vubh,ubhd->vbhd", a, ft)            # (N, B, H, Dout)


if __name__ == "__main__":
    N, B, DIN, HEADS, DOUT = 16, 2, 8, 4, 32   # H*Dout = 128 (lane-dense)
    SLOPE = 0.2

    root = jax.random.PRNGKey(0)
    kf, kw, kl, kr, ka = jax.random.split(root, 5)

    feat = jax.random.normal(kf, (N, B, DIN), jnp.float32)
    # xavier-normal-like scales (gain for relu), matching reset_parameters()
    w_std = (2.0 ** 0.5) * (2.0 / (DIN + HEADS * DOUT)) ** 0.5
    w = jax.random.normal(kw, (DIN, HEADS * DOUT), jnp.float32) * w_std
    attn_l = jax.random.normal(kl, (HEADS, DOUT), jnp.float32) * 0.15
    attn_r = jax.random.normal(kr, (HEADS, DOUT), jnp.float32) * 0.15
    # deterministic random directed graph; self-loops guarantee every node has
    # at least one incoming edge (well-defined edge softmax).
    adj = ((jax.random.uniform(ka, (N, N)) < 0.3) |
           jnp.eye(N, dtype=bool)).astype(jnp.float32)

    out = batch_gat_conv(feat, adj, w, attn_l, attn_r, negative_slope=SLOPE)
    out = jax.block_until_ready(out)
    assert out.shape == (N, B, HEADS, DOUT)

    ref = gat_ref(feat, adj, w, attn_l, attn_r, negative_slope=SLOPE)
    max_err = float(jnp.max(jnp.abs(out - ref)))
    assert max_err < 2e-2, f"mismatch vs reference: {max_err}"

    print("KERNEL_OK")
</pallas_src>

<mosaic_0001>
module attributes {stable_mosaic.version = 11 : i64} {
  func.func @_gat_kernel(%arg0: i32, %arg1: memref<1x16x8xf32, #tpu.memory_space<vmem>>, %arg2: memref<8x128xf32, #tpu.memory_space<vmem>>, %arg3: memref<4x128xf32, #tpu.memory_space<vmem>>, %arg4: memref<128x4xf32, #tpu.memory_space<vmem>>, %arg5: memref<16x16xf32, #tpu.memory_space<vmem>>, %arg6: memref<1x16x128xf32, #tpu.memory_space<vmem>>) attributes {dimension_semantics = [#tpu.dimension_semantics<parallel>], iteration_bounds = array<i64: 2>, scalar_prefetch = 0 : i64, scratch_operands = 0 : i64, tpu.core_type = #tpu.core_type<tc>, window_params = [{transform_indices = @transform_0, window_bounds = array<i64: 1, 16, 8>}, {pipeline_mode = #tpu.pipeline_mode<synchronous>, transform_indices = @transform_1, window_bounds = array<i64: 8, 128>}, {pipeline_mode = #tpu.pipeline_mode<synchronous>, transform_indices = @transform_2, window_bounds = array<i64: 4, 128>}, {pipeline_mode = #tpu.pipeline_mode<synchronous>, transform_indices = @transform_3, window_bounds = array<i64: 128, 4>}, {pipeline_mode = #tpu.pipeline_mode<synchronous>, transform_indices = @transform_4, window_bounds = array<i64: 16, 16>}, {transform_indices = @transform_5, window_bounds = array<i64: 1, 16, 128>}]} {
    %c0 = arith.constant 0 : index
    %c0_0 = arith.constant 0 : index
    %c0_1 = arith.constant 0 : index
    %0 = vector.load %arg1[%c0, %c0_0, %c0_1] : memref<1x16x8xf32, #tpu.memory_space<vmem>>, vector<1x16x8xf32>
    %1 = vector.shape_cast %0 : vector<1x16x8xf32> to vector<16x8xf32>
    %c0_2 = arith.constant 0 : index
    %c0_3 = arith.constant 0 : index
    %2 = vector.load %arg2[%c0_2, %c0_3] : memref<8x128xf32, #tpu.memory_space<vmem>>, vector<8x128xf32>
    %cst = arith.constant dense<0.000000e+00> : vector<16x128xf32>
    %3 = tpu.matmul %1, %2, %cst {dimension_numbers = #tpu.dot_dimension_numbers<[1], [0], [0], [1], [0, 0, 1, 1], [], []>} : vector<16x8xf32>, vector<8x128xf32>, vector<16x128xf32> -> vector<16x128xf32>
    %c0_4 = arith.constant 0 : index
    %c0_5 = arith.constant 0 : index
    %4 = vector.load %arg3[%c0_4, %c0_5] : memref<4x128xf32, #tpu.memory_space<vmem>>, vector<4x128xf32>
    %cst_6 = arith.constant dense<0.000000e+00> : vector<4x16xf32>
    %5 = tpu.matmul %4, %3, %cst_6 {dimension_numbers = #tpu.dot_dimension_numbers<[1], [1], [0], [0], [0, 0, 1, 0], [], []>} : vector<4x128xf32>, vector<16x128xf32>, vector<4x16xf32> -> vector<4x16xf32>
    %c0_7 = arith.constant 0 : index
    %c0_8 = arith.constant 0 : index
    %6 = vector.load %arg4[%c0_7, %c0_8] : memref<128x4xf32, #tpu.memory_space<vmem>>, vector<128x4xf32>
    %cst_9 = arith.constant dense<0.000000e+00> : vector<16x4xf32>
    %7 = tpu.matmul %3, %6, %cst_9 {dimension_numbers = #tpu.dot_dimension_numbers<[1], [0], [0], [1], [0, 0, 1, 1], [], []>} : vector<16x128xf32>, vector<128x4xf32>, vector<16x4xf32> -> vector<16x4xf32>
    %c0_10 = arith.constant 0 : index
    %c0_11 = arith.constant 0 : index
    %8 = vector.load %arg5[%c0_10, %c0_11] : memref<16x16xf32, #tpu.memory_space<vmem>>, vector<16x16xf32>
    %cst_12 = arith.constant 0.000000e+00 : f32
    %9 = vector.broadcast %cst_12 : f32 to vector<16x16xf32>
    %10 = arith.cmpf ogt, %8, %9 : vector<16x16xf32>
    %cst_13 = arith.constant 0.000000e+00 : f32
    %cst_14 = arith.constant -1.000000e+30 : f32
    %11 = vector.broadcast %cst_13 : f32 to vector<16x16xf32>
    %12 = vector.broadcast %cst_14 : f32 to vector<16x16xf32>
    %13 = arith.select %10, %11, %12 : vector<16x16xi1>, vector<16x16xf32>
    %14 = vector.extract_strided_slice %7 {offsets = [0, 0], sizes = [16, 1], strides = [1, 1]} : vector<16x4xf32> to vector<16x1xf32>
    %15 = vector.extract_strided_slice %5 {offsets = [0, 0], sizes = [1, 16], strides = [1, 1]} : vector<4x16xf32> to vector<1x16xf32>
    %16 = vector.broadcast %14 : vector<16x1xf32> to vector<16x16xf32>
    %17 = vector.broadcast %15 : vector<1x16xf32> to vector<16x16xf32>
    %18 = arith.addf %16, %17 : vector<16x16xf32>
    %cst_15 = arith.constant 0.000000e+00 : f32
    %19 = vector.broadcast %cst_15 : f32 to vector<16x16xf32>
    %20 = arith.cmpf oge, %18, %19 : vector<16x16xf32>
    %cst_16 = arith.constant 2.000000e-01 : f32
    %21 = vector.broadcast %cst_16 : f32 to vector<16x16xf32>
    %22 = arith.mulf %21, %18 : vector<16x16xf32>
    %23 = arith.select %20, %18, %22 : vector<16x16xi1>, vector<16x16xf32>
    %24 = arith.addf %23, %13 : vector<16x16xf32>
    %cst_17 = arith.constant dense<0xFF800000> : vector<16xf32>
    %25 = vector.multi_reduction <maximumf>, %24, %cst_17 [1] : vector<16x16xf32> to vector<16xf32>
    %26 = vector.shape_cast %25 : vector<16xf32> to vector<16x1xf32>
    %27 = vector.broadcast %26 : vector<16x1xf32> to vector<16x16xf32>
    %28 = arith.subf %24, %27 : vector<16x16xf32>
    %29 = math.exp %28 : vector<16x16xf32>
    %cst_18 = arith.constant 0.000000e+00 : f32
    %30 = vector.broadcast %cst_18 : f32 to vector<16x16xf32>
    %31 = arith.select %10, %29, %30 : vector<16x16xi1>, vector<16x16xf32>
    %cst_19 = arith.constant dense<0.000000e+00> : vector<16xf32>
    %32 = vector.multi_reduction <add>, %31, %cst_19 [1] : vector<16x16xf32> to vector<16xf32>
    %33 = vector.shape_cast %32 : vector<16xf32> to vector<16x1xf32>
    %cst_20 = arith.constant 0.000000e+00 : f32
    %34 = vector.broadcast %cst_20 : f32 to vector<16x1xf32>
    %35 = arith.cmpf oeq, %33, %34 : vector<16x1xf32>
    %cst_21 = arith.constant 1.000000e+00 : f32
    %36 = vector.broadcast %cst_21 : f32 to vector<16x1xf32>
    %37 = arith.select %35, %36, %33 : vector<16x1xi1>, vector<16x1xf32>
    %38 = tpu.reciprocal %37 {approx = true} : vector<16x1xf32> -> vector<16x1xf32>
    %39 = vector.broadcast %38 : vector<16x1xf32> to vector<16x16xf32>
    %40 = arith.mulf %31, %39 : vector<16x16xf32>
    %41 = vector.extract_strided_slice %3 {offsets = [0, 0], sizes = [16, 32], strides = [1, 1]} : vector<16x128xf32> to vector<16x32xf32>
    %cst_22 = arith.constant dense<0.000000e+00> : vector<16x32xf32>
    %42 = tpu.matmul %40, %41, %cst_22 {dimension_numbers = #tpu.dot_dimension_numbers<[1], [0], [0], [1], [0, 0, 1, 1], [], []>} : vector<16x16xf32>, vector<16x32xf32>, vector<16x32xf32> -> vector<16x32xf32>
    %43 = vector.extract_strided_slice %7 {offsets = [0, 1], sizes = [16, 1], strides = [1, 1]} : vector<16x4xf32> to vector<16x1xf32>
    %44 = vector.extract_strided_slice %5 {offsets = [1, 0], sizes = [1, 16], strides = [1, 1]} : vector<4x16xf32> to vector<1x16xf32>
    %45 = vector.broadcast %43 : vector<16x1xf32> to vector<16x16xf32>
    %46 = vector.broadcast %44 : vector<1x16xf32> to vector<16x16xf32>
    %47 = arith.addf %45, %46 : vector<16x16xf32>
    %cst_23 = arith.constant 0.000000e+00 : f32
    %48 = vector.broadcast %cst_23 : f32 to vector<16x16xf32>
    %49 = arith.cmpf oge, %47, %48 : vector<16x16xf32>
    %cst_24 = arith.constant 2.000000e-01 : f32
    %50 = vector.broadcast %cst_24 : f32 to vector<16x16xf32>
    %51 = arith.mulf %50, %47 : vector<16x16xf32>
    %52 = arith.select %49, %47, %51 : vector<16x16xi1>, vector<16x16xf32>
    %53 = arith.addf %52, %13 : vector<16x16xf32>
    %cst_25 = arith.constant dense<0xFF800000> : vector<16xf32>
    %54 = vector.multi_reduction <maximumf>, %53, %cst_25 [1] : vector<16x16xf32> to vector<16xf32>
    %55 = vector.shape_cast %54 : vector<16xf32> to vector<16x1xf32>
    %56 = vector.broadcast %55 : vector<16x1xf32> to vector<16x16xf32>
    %57 = arith.subf %53, %56 : vector<16x16xf32>
    %58 = math.exp %57 : vector<16x16xf32>
    %cst_26 = arith.constant 0.000000e+00 : f32
    %59 = vector.broadcast %cst_26 : f32 to vector<16x16xf32>
    %60 = arith.select %10, %58, %59 : vector<16x16xi1>, vector<16x16xf32>
    %cst_27 = arith.constant dense<0.000000e+00> : vector<16xf32>
    %61 = vector.multi_reduction <add>, %60, %cst_27 [1] : vector<16x16xf32> to vector<16xf32>
    %62 = vector.shape_cast %61 : vector<16xf32> to vector<16x1xf32>
    %cst_28 = arith.constant 0.000000e+00 : f32
    %63 = vector.broadcast %cst_28 : f32 to vector<16x1xf32>
    %64 = arith.cmpf oeq, %62, %63 : vector<16x1xf32>
    %cst_29 = arith.constant 1.000000e+00 : f32
    %65 = vector.broadcast %cst_29 : f32 to vector<16x1xf32>
    %66 = arith.select %64, %65, %62 : vector<16x1xi1>, vector<16x1xf32>
    %67 = tpu.reciprocal %66 {approx = true} : vector<16x1xf32> -> vector<16x1xf32>
    %68 = vector.broadcast %67 : vector<16x1xf32> to vector<16x16xf32>
    %69 = arith.mulf %60, %68 : vector<16x16xf32>
    %70 = vector.extract_strided_slice %3 {offsets = [0, 32], sizes = [16, 32], strides = [1, 1]} : vector<16x128xf32> to vector<16x32xf32>
    %cst_30 = arith.constant dense<0.000000e+00> : vector<16x32xf32>
    %71 = tpu.matmul %69, %70, %cst_30 {dimension_numbers = #tpu.dot_dimension_numbers<[1], [0], [0], [1], [0, 0, 1, 1], [], []>} : vector<16x16xf32>, vector<16x32xf32>, vector<16x32xf32> -> vector<16x32xf32>
    %72 = vector.extract_strided_slice %7 {offsets = [0, 2], sizes = [16, 1], strides = [1, 1]} : vector<16x4xf32> to vector<16x1xf32>
    %73 = vector.extract_strided_slice %5 {offsets = [2, 0], sizes = [1, 16], strides = [1, 1]} : vector<4x16xf32> to vector<1x16xf32>
    %74 = vector.broadcast %72 : vector<16x1xf32> to vector<16x16xf32>
    %75 = vector.broadcast %73 : vector<1x16xf32> to vector<16x16xf32>
    %76 = arith.addf %74, %75 : vector<16x16xf32>
    %cst_31 = arith.constant 0.000000e+00 : f32
    %77 = vector.broadcast %cst_31 : f32 to vector<16x16xf32>
    %78 = arith.cmpf oge, %76, %77 : vector<16x16xf32>
    %cst_32 = arith.constant 2.000000e-01 : f32
    %79 = vector.broadcast %cst_32 : f32 to vector<16x16xf32>
    %80 = arith.mulf %79, %76 : vector<16x16xf32>
    %81 = arith.select %78, %76, %80 : vector<16x16xi1>, vector<16x16xf32>
    %82 = arith.addf %81, %13 : vector<16x16xf32>
    %cst_33 = arith.constant dense<0xFF800000> : vector<16xf32>
    %83 = vector.multi_reduction <maximumf>, %82, %cst_33 [1] : vector<16x16xf32> to vector<16xf32>
    %84 = vector.shape_cast %83 : vector<16xf32> to vector<16x1xf32>
    %85 = vector.broadcast %84 : vector<16x1xf32> to vector<16x16xf32>
    %86 = arith.subf %82, %85 : vector<16x16xf32>
    %87 = math.exp %86 : vector<16x16xf32>
    %cst_34 = arith.constant 0.000000e+00 : f32
    %88 = vector.broadcast %cst_34 : f32 to vector<16x16xf32>
    %89 = arith.select %10, %87, %88 : vector<16x16xi1>, vector<16x16xf32>
    %cst_35 = arith.constant dense<0.000000e+00> : vector<16xf32>
    %90 = vector.multi_reduction <add>, %89, %cst_35 [1] : vector<16x16xf32> to vector<16xf32>
    %91 = vector.shape_cast %90 : vector<16xf32> to vector<16x1xf32>
    %cst_36 = arith.constant 0.000000e+00 : f32
    %92 = vector.broadcast %cst_36 : f32 to vector<16x1xf32>
    %93 = arith.cmpf oeq, %91, %92 : vector<16x1xf32>
    %cst_37 = arith.constant 1.000000e+00 : f32
    %94 = vector.broadcast %cst_37 : f32 to vector<16x1xf32>
    %95 = arith.select %93, %94, %91 : vector<16x1xi1>, vector<16x1xf32>
    %96 = tpu.reciprocal %95 {approx = true} : vector<16x1xf32> -> vector<16x1xf32>
    %97 = vector.broadcast %96 : vector<16x1xf32> to vector<16x16xf32>
    %98 = arith.mulf %89, %97 : vector<16x16xf32>
    %99 = vector.extract_strided_slice %3 {offsets = [0, 64], sizes = [16, 32], strides = [1, 1]} : vector<16x128xf32> to vector<16x32xf32>
    %cst_38 = arith.constant dense<0.000000e+00> : vector<16x32xf32>
    %100 = tpu.matmul %98, %99, %cst_38 {dimension_numbers = #tpu.dot_dimension_numbers<[1], [0], [0], [1], [0, 0, 1, 1], [], []>} : vector<16x16xf32>, vector<16x32xf32>, vector<16x32xf32> -> vector<16x32xf32>
    %101 = vector.extract_strided_slice %7 {offsets = [0, 3], sizes = [16, 1], strides = [1, 1]} : vector<16x4xf32> to vector<16x1xf32>
    %102 = vector.extract_strided_slice %5 {offsets = [3, 0], sizes = [1, 16], strides = [1, 1]} : vector<4x16xf32> to vector<1x16xf32>
    %103 = vector.broadcast %101 : vector<16x1xf32> to vector<16x16xf32>
    %104 = vector.broadcast %102 : vector<1x16xf32> to vector<16x16xf32>
    %105 = arith.addf %103, %104 : vector<16x16xf32>
    %cst_39 = arith.constant 0.000000e+00 : f32
    %106 = vector.broadcast %cst_39 : f32 to vector<16x16xf32>
    %107 = arith.cmpf oge, %105, %106 : vector<16x16xf32>
    %cst_40 = arith.constant 2.000000e-01 : f32
    %108 = vector.broadcast %cst_40 : f32 to vector<16x16xf32>
    %109 = arith.mulf %108, %105 : vector<16x16xf32>
    %110 = arith.select %107, %105, %109 : vector<16x16xi1>, vector<16x16xf32>
    %111 = arith.addf %110, %13 : vector<16x16xf32>
    %cst_41 = arith.constant dense<0xFF800000> : vector<16xf32>
    %112 = vector.multi_reduction <maximumf>, %111, %cst_41 [1] : vector<16x16xf32> to vector<16xf32>
    %113 = vector.shape_cast %112 : vector<16xf32> to vector<16x1xf32>
    %114 = vector.broadcast %113 : vector<16x1xf32> to vector<16x16xf32>
    %115 = arith.subf %111, %114 : vector<16x16xf32>
    %116 = math.exp %115 : vector<16x16xf32>
    %cst_42 = arith.constant 0.000000e+00 : f32
    %117 = vector.broadcast %cst_42 : f32 to vector<16x16xf32>
    %118 = arith.select %10, %116, %117 : vector<16x16xi1>, vector<16x16xf32>
    %cst_43 = arith.constant dense<0.000000e+00> : vector<16xf32>
    %119 = vector.multi_reduction <add>, %118, %cst_43 [1] : vector<16x16xf32> to vector<16xf32>
    %120 = vector.shape_cast %119 : vector<16xf32> to vector<16x1xf32>
    %cst_44 = arith.constant 0.000000e+00 : f32
    %121 = vector.broadcast %cst_44 : f32 to vector<16x1xf32>
    %122 = arith.cmpf oeq, %120, %121 : vector<16x1xf32>
    %cst_45 = arith.constant 1.000000e+00 : f32
    %123 = vector.broadcast %cst_45 : f32 to vector<16x1xf32>
    %124 = arith.select %122, %123, %120 : vector<16x1xi1>, vector<16x1xf32>
    %125 = tpu.reciprocal %124 {approx = true} : vector<16x1xf32> -> vector<16x1xf32>
    %126 = vector.broadcast %125 : vector<16x1xf32> to vector<16x16xf32>
    %127 = arith.mulf %118, %126 : vector<16x16xf32>
    %128 = vector.extract_strided_slice %3 {offsets = [0, 96], sizes = [16, 32], strides = [1, 1]} : vector<16x128xf32> to vector<16x32xf32>
    %cst_46 = arith.constant dense<0.000000e+00> : vector<16x32xf32>
    %129 = tpu.matmul %127, %128, %cst_46 {dimension_numbers = #tpu.dot_dimension_numbers<[1], [0], [0], [1], [0, 0, 1, 1], [], []>} : vector<16x16xf32>, vector<16x32xf32>, vector<16x32xf32> -> vector<16x32xf32>
    %130 = tpu.concatenate %42, %71, %100, %129 in 1 : vector<16x32xf32>, vector<16x32xf32>, vector<16x32xf32>, vector<16x32xf32> -> vector<16x128xf32>
    %c0_47 = arith.constant 0 : index
    %c0_48 = arith.constant 0 : index
    %c0_49 = arith.constant 0 : index
    %131 = vector.load %arg6[%c0_47, %c0_48, %c0_49] : memref<1x16x128xf32, #tpu.memory_space<vmem>>, vector<1x16x128xf32>
    %132 = vector.shape_cast %131 : vector<1x16x128xf32> to vector<16x128xf32>
    %133 = vector.shape_cast %130 : vector<16x128xf32> to vector<1x16x128xf32>
    tpu.vector_store %arg6[%c0_47, %c0_48, %c0_49], %133 {strides = array<i32>} : memref<1x16x128xf32, #tpu.memory_space<vmem>>, vector<1x16x128xf32>,
    return
  }
  func.func @transform_0(%arg0: i32) -> (i32, i32, i32) {
    %c0_i32 = arith.constant 0 : i32
    %c0_i32_0 = arith.constant 0 : i32
    %c0_i32_1 = arith.constant 0 : i32
    return %arg0, %c0_i32, %c0_i32_0 : i32, i32, i32
  }
  func.func @transform_1(%arg0: i32) -> (i32, i32) {
    %c0_i32 = arith.constant 0 : i32
    %c0_i32_0 = arith.constant 0 : i32
    %c0_i32_1 = arith.constant 0 : i32
    return %c0_i32, %c0_i32_0 : i32, i32
  }
  func.func @transform_2(%arg0: i32) -> (i32, i32) {
    %c0_i32 = arith.constant 0 : i32
    %c0_i32_0 = arith.constant 0 : i32
    %c0_i32_1 = arith.constant 0 : i32
    return %c0_i32, %c0_i32_0 : i32, i32
  }
  func.func @transform_3(%arg0: i32) -> (i32, i32) {
    %c0_i32 = arith.constant 0 : i32
    %c0_i32_0 = arith.constant 0 : i32
    %c0_i32_1 = arith.constant 0 : i32
    return %c0_i32, %c0_i32_0 : i32, i32
  }
  func.func @transform_4(%arg0: i32) -> (i32, i32) {
    %c0_i32 = arith.constant 0 : i32
    %c0_i32_0 = arith.constant 0 : i32
    %c0_i32_1 = arith.constant 0 : i32
    return %c0_i32, %c0_i32_0 : i32, i32
  }
  func.func @transform_5(%arg0: i32) -> (i32, i32, i32) {
    %c0_i32 = arith.constant 0 : i32
    %c0_i32_0 = arith.constant 0 : i32
    %c0_i32_1 = arith.constant 0 : i32
    return %arg0, %c0_i32, %c0_i32_0 : i32, i32, i32
  }
}

</mosaic_0001>

<llo_original>
// kernel: tpu_custom_call.1
$region0: #{tpu_custom_call.1}
  #allocation0 [shape = 'u32[]', space=smem, size = 0x4, offset = 0x4, fixed_abs, tag = 'smem constant byte address 0x4 - core index']
  #allocation1 [shape = 'u32[144,128]{1,0:T(1,128)}', space=vmem, size = 0x12000, scoped, tag = 'internal scratch']
  %s0 = inlined_call_operand.vmem [shape: f32[2,16,8], index: 0, kind: input, shape index: {}]
  %s1 = inlined_call_operand.vmem [shape: f32[8,128], index: 1, kind: input, shape index: {}]
  %s2 = inlined_call_operand.vmem [shape: f32[4,128], index: 2, kind: input, shape index: {}]
  %s3 = inlined_call_operand.vmem [shape: f32[128,4], index: 3, kind: input, shape index: {}]
  %s4 = inlined_call_operand.vmem [shape: f32[16,16], index: 4, kind: input, shape index: {}]
  %s5 = inlined_call_operand.hbm [shape: f32[2,16,128], index: 5, kind: output, shape index: {}]
  %s6 = sld [smem:[#allocation0]]
  $region53: #{tpu_custom_call.1} parent=0
    _
  %s8 = ssub.s32 1, %s6
  %s9 = scalar_select 0, %s8, %s6
  $region1: #{tpu_custom_call.1} parent=0
    #allocation2 [shape = 'u8[16384]{0}', space=vmem, size = 0x4000, scoped, tag = 'output window, operand 0']
    #allocation3 [shape = 's32[2]{0}', space=sflag, size = 0x8, scoped, tag = 'scoped memory for tpu_custom_call.1']
    %10 = vsyncpa [#allocation3], 0
    %s11 = scalar_lea.sflag [#allocation3], 1
    %12 = vsyncpa %s11, 0
    loop: start=0, step=1, limit=4
    $region2: #{tpu_custom_call.1} parent=1 // loop_pre_header
      _
    $region3: #{tpu_custom_call.1} parent=1 // loop_header
      %s14 = sphi 0, %s18
      %p15 = scmp.ge.s32.totalorder %s14, 4
      %s24 = sphi 0, %s26
      %s27 = sphi 0, %s24
      %s28 = sphi 0, %s27
      %s44 = sphi 0, %s28
      %s48 = sphi 0, %s48
      %s50 = sphi 0, %s48
      %s51 = sphi 0, %s50
      %s65 = sphi 0, %s51
      %s69 = sphi 0, %s69
      %s71 = sphi 0, %s69
      %s72 = sphi 0, %s71
      %s86 = sphi 0, %s72
      %s90 = sphi 0, %s90
      %s92 = sphi 0, %s90
      %s93 = sphi 0, %s92
      %s107 = sphi 0, %s93
      %s111 = sphi 0, %s111
      %s113 = sphi 0, %s111
      %s114 = sphi 0, %s113
      %s128 = sphi 0, %s114
      %s134 = sphi 0, %s136
      %s137 = sphi 0, %s134
      %s138 = sphi 0, %s137
      %s154 = sphi 0, %s138
    $region4: #{tpu_custom_call.1} parent=1 // loop_header_branch
      %17 = sbr.rel (%p15) target = $region8
    $region5: #{tpu_custom_call.1} parent=1 // loop_body
      %s19 = ssub.s32 %s14, 1
      %s20 = ssub.s32 %s14, 2
      %s21 = sadd.s32 %s14, 1
      %s22 = ssub.s32 %s14, %s21
      %p23 = scmp.eq.s32.totalorder %s22, 0
      %s25 = sadd.s32 %s24, 1
      %s26 = scalar_select %p23, %s24, %s25
      %p29 = pneg %p23
      %p30 = scmp.eq.s32.totalorder %s14, 1
      %p31 = por %p29, %p30
      %p32 = scmp.ne.s32.totalorder %s24, %s27
      %p33 = scmp.eq.s32.totalorder %s14, 0
      %p34 = por %p32, %p33
      %p35 = scmp.ne.s32.totalorder %s24, %s27
      %p36 = scmp.eq.s32.totalorder %s19, 1
      %p37 = por %p35, %p36
      %p38 = scmp.ne.s32.totalorder %s27, %s28
      %p39 = scmp.eq.s32.totalorder %s19, 0
      %p40 = por %p38, %p39
      %p41 = scmp.ne.s32.totalorder %s27, %s28
      %p42 = scmp.eq.s32.totalorder %s20, 1
      %p43 = por %p41, %p42
      %p45 = scmp.ne.s32.totalorder %s28, %s44
      %p46 = scmp.eq.s32.totalorder %s20, 0
      %p47 = por %p45, %p46
      %s49 = sadd.s32 %s48, 1
      %p52 = scmp.eq.s32.totalorder %s14, 1
      %p53 = scmp.ne.s32.totalorder %s48, %s50
      %p54 = scmp.eq.s32.totalorder %s14, 0
      %p55 = por %p53, %p54
      %p56 = scmp.ne.s32.totalorder %s48, %s50
      %p57 = scmp.eq.s32.totalorder %s19, 1
      %p58 = por %p56, %p57
      %p59 = scmp.ne.s32.totalorder %s50, %s51
      %p60 = scmp.eq.s32.totalorder %s19, 0
      %p61 = por %p59, %p60
      %p62 = scmp.ne.s32.totalorder %s50, %s51
      %p63 = scmp.eq.s32.totalorder %s20, 1
      %p64 = por %p62, %p63
      %p66 = scmp.ne.s32.totalorder %s51, %s65
      %p67 = scmp.eq.s32.totalorder %s20, 0
      %p68 = por %p66, %p67
      %s70 = sadd.s32 %s69, 1
      %p73 = scmp.eq.s32.totalorder %s14, 1
      %p74 = scmp.ne.s32.totalorder %s69, %s71
      %p75 = scmp.eq.s32.totalorder %s14, 0
      %p76 = por %p74, %p75
      %p77 = scmp.ne.s32.totalorder %s69, %s71
      %p78 = scmp.eq.s32.totalorder %s19, 1
      %p79 = por %p77, %p78
      %p80 = scmp.ne.s32.totalorder %s71, %s72
      %p81 = scmp.eq.s32.totalorder %s19, 0
      %p82 = por %p80, %p81
      %p83 = scmp.ne.s32.totalorder %s71, %s72
      %p84 = scmp.eq.s32.totalorder %s20, 1
      %p85 = por %p83, %p84
      %p87 = scmp.ne.s32.totalorder %s72, %s86
      %p88 = scmp.eq.s32.totalorder %s20, 0
      %p89 = por %p87, %p88
      %s91 = sadd.s32 %s90, 1
      %p94 = scmp.eq.s32.totalorder %s14, 1
      %p95 = scmp.ne.s32.totalorder %s90, %s92
      %p96 = scmp.eq.s32.totalorder %s14, 0
      %p97 = por %p95, %p96
      %p98 = scmp.ne.s32.totalorder %s90, %s92
      %p99 = scmp.eq.s32.totalorder %s19, 1
      %p100 = por %p98, %p99
      %p101 = scmp.ne.s32.totalorder %s92, %s93
      %p102 = scmp.eq.s32.totalorder %s19, 0
      %p103 = por %p101, %p102
      %p104 = scmp.ne.s32.totalorder %s92, %s93
      %p105 = scmp.eq.s32.totalorder %s20, 1
      %p106 = por %p104, %p105
      %p108 = scmp.ne.s32.totalorder %s93, %s107
      %p109 = scmp.eq.s32.totalorder %s20, 0
      %p110 = por %p108, %p109
      %s112 = sadd.s32 %s111, 1
      %p115 = scmp.eq.s32.totalorder %s14, 1
      %p116 = scmp.ne.s32.totalorder %s111, %s113
      %p117 = scmp.eq.s32.totalorder %s14, 0
      %p118 = por %p116, %p117
      %p119 = scmp.ne.s32.totalorder %s111, %s113
      %p120 = scmp.eq.s32.totalorder %s19, 1
      %p121 = por %p119, %p120
      %p122 = scmp.ne.s32.totalorder %s113, %s114
      %p123 = scmp.eq.s32.totalorder %s19, 0
      %p124 = por %p122, %p123
      %p125 = scmp.ne.s32.totalorder %s113, %s114
      %p126 = scmp.eq.s32.totalorder %s20, 1
      %p127 = por %p125, %p126
      %p129 = scmp.ne.s32.totalorder %s114, %s128
      %p130 = scmp.eq.s32.totalorder %s20, 0
      %p131 = por %p129, %p130
      %s132 = ssub.s32 %s14, %s21
      %p133 = scmp.eq.s32.totalorder %s132, 0
      %s135 = sadd.s32 %s134, 1
      %s136 = scalar_select %p133, %s134, %s135
      %p139 = pneg %p133
      %p140 = scmp.eq.s32.totalorder %s14, 1
      %p141 = por %p139, %p140
      %p142 = scmp.ne.s32.totalorder %s134, %s137
      %p143 = scmp.eq.s32.totalorder %s14, 0
      %p144 = por %p142, %p143
      %p145 = scmp.ne.s32.totalorder %s134, %s137
      %p146 = scmp.eq.s32.totalorder %s19, 1
      %p147 = por %p145, %p146
      %p148 = scmp.ne.s32.totalorder %s137, %s138
      %p149 = scmp.eq.s32.totalorder %s19, 0
      %p150 = por %p148, %p149
      %p151 = scmp.ne.s32.totalorder %s137, %s138
      %p152 = scmp.eq.s32.totalorder %s20, 1
      %p153 = por %p151, %p152
      %p155 = scmp.ne.s32.totalorder %s138, %s154
      %p156 = scmp.eq.s32.totalorder %s20, 0
      %p157 = por %p155, %p156
      %p158 = scmp.le.s32.totalorder 1, %s14
      %p159 = scmp.lt.s32.totalorder %s14, 3
      %p160 = pnand %p158, %p159
      %p161 = pneg %p160
      // Predicated region
      $region9: #{tpu_custom_call.1} parent=5 // pred_check
        _
      $region10: #{tpu_custom_call.1} parent=5 // pred_check_branch
        %163 = sbr.rel (%p160) target = $region12
      $region11: #{tpu_custom_call.1} parent=5 // pred_region
        %s164 = ssub.s32 %s14, 1
        // Predicated region
        $region13: #{tpu_custom_call.1} parent=11 // pred_check
          %p165 = pneg %p61
        $region14: #{tpu_custom_call.1} parent=11 // pred_check_branch
          %167 = sbr.rel (%p165) target = $region16
        $region15: #{tpu_custom_call.1} parent=11 // pred_region
          _
        $region16: #{tpu_custom_call.1} parent=11 // pred_fallthru
          _
        // Predicated region
        $region17: #{tpu_custom_call.1} parent=11 // pred_check
          %p168 = pneg %p82
        $region18: #{tpu_custom_call.1} parent=11 // pred_check_branch
          %170 = sbr.rel (%p168) target = $region20
        $region19: #{tpu_custom_call.1} parent=11 // pred_region
          _
        $region20: #{tpu_custom_call.1} parent=11 // pred_fallthru
          _
        // Predicated region
        $region21: #{tpu_custom_call.1} parent=11 // pred_check
          %p171 = pneg %p103
        $region22: #{tpu_custom_call.1} parent=11 // pred_check_branch
          %173 = sbr.rel (%p171) target = $region24
        $region23: #{tpu_custom_call.1} parent=11 // pred_region
          _
        $region24: #{tpu_custom_call.1} parent=11 // pred_fallthru
          _
        // Predicated region
        $region25: #{tpu_custom_call.1} parent=11 // pred_check
          %p174 = pneg %p124
        $region26: #{tpu_custom_call.1} parent=11 // pred_check_branch
          %176 = sbr.rel (%p174) target = $region28
        $region27: #{tpu_custom_call.1} parent=11 // pred_region
          _
        $region28: #{tpu_custom_call.1} parent=11 // pred_fallthru
          _
      $region12: #{tpu_custom_call.1} parent=5 // pred_fallthru
        _
      %p177 = scmp.lt.s32.totalorder %s14, 2
      // Predicated region
      $region29: #{tpu_custom_call.1} parent=5 // pred_check
        %p178 = pneg %p177
      $region30: #{tpu_custom_call.1} parent=5 // pred_check_branch
        %180 = sbr.rel (%p178) target = $region32
      $region31: #{tpu_custom_call.1} parent=5 // pred_region
        // Predicated region
        $region33: #{tpu_custom_call.1} parent=31 // pred_check
          %p181 = pneg %p34
        $region34: #{tpu_custom_call.1} parent=31 // pred_check_branch
          %183 = sbr.rel (%p181) target = $region36
        $region35: #{tpu_custom_call.1} parent=31 // pred_region
          %p184 = scmp.lt.s32.totalorder %s14, 1
          %s185 = scalar_select %p184, %s14, 1
          %s186 = smul.addr %s185, 2
          %s187 = smul.addr %s186, 8
          %s188 = scalar_lea.vmem %s0, %s187
        $region36: #{tpu_custom_call.1} parent=31 // pred_fallthru
          _
      $region32: #{tpu_custom_call.1} parent=5 // pred_fallthru
        _
      %p189 = scmp.le.s32.totalorder 1, %s14
      %p190 = scmp.lt.s32.totalorder %s14, 3
      %p191 = pnand %p189, %p190
      %p192 = pneg %p191
      // Predicated region
      $region37: #{tpu_custom_call.1} parent=5 // pred_check
        _
      $region38: #{tpu_custom_call.1} parent=5 // pred_check_branch
        %194 = sbr.rel (%p191) target = $region40
      $region39: #{tpu_custom_call.1} parent=5 // pred_region
        %s195 = ssub.s32 %s14, 1
        %p196 = scmp.lt.s32.totalorder %s19, 1
        %s197 = scalar_select %p196, %s19, 1
        %s198 = smul.addr %s197, 2
        %s199 = smul.addr %s198, 8
        %s200 = scalar_lea.vmem %s0, %s199
        %p201 = pneg %p40
        %p202 = pneg %p37
        %p203 = pneg %p61
        %p204 = pneg %p58
        %p205 = pneg %p82
        %p206 = pneg %p79
        %p207 = pneg %p103
        %p208 = pneg %p100
        %p209 = pneg %p124
        %p210 = pneg %p121
        %p211 = pneg %p150
        %p212 = pneg %p147
        %s213 = sand.u32 %s137, 1
        %s214 = scalar_lea.sflag [#allocation3], %s213
        %s215 = sand.u32 %s137, 1
        %s216 = smul.addr %s215, 16
        %s217 = scalar_lea.vmem [#allocation2], %s216
        %p218 = scmp.lt.s32.totalorder %s19, 1
        %s219 = scalar_select %p218, %s19, 1
        %s220 = smul.addr %s219, 2
        %s221 = smul.addr %s220, 8
        %s222 = scalar_lea.vmem %s0, %s221
        %v223 = vld [vmem:[%s222] sm:$0xff]
        %v224 = vld [vmem:[%s222 + $0x8] sm:$0xff]
        %v225 = vld [vmem:[%s1] sm:$0xff]
        %vm226 = vcmask 64512
        %v228 = vsel %vm226, %v223, 0
        %v231 = vsel %vm226, %v224, 0
        %233 = vmatprep.subr.mxu0 0.0
        %234 = vmatpush1.msra.mxu0 %v225
        %235 = vmatprep.subr.mxu0 0.0
        %236 = vmatpush1.msra.mxu0 0.0
        %237 = vmatprep.subr.mxu0 0.0
        %238 = vmatpush1.msra.mxu0 0.0
        %239 = vmatprep.subr.mxu0 0.0
        %240 = vmatpush1.msra.mxu0 0.0
        %241 = vmatprep.subr.mxu0 0.0
        %242 = vmatpush1.msra.mxu0 0.0
        %243 = vmatprep.subr.mxu0 0.0
        %244 = vmatpush1.msra.mxu0 0.0
        %245 = vmatprep.subr.mxu0 0.0
        %246 = vmatpush1.msra.mxu0 0.0
        %247 = vmatprep.subr.mxu0 0.0
        %248 = vmatpush1.msra.mxu0 0.0
        %249 = vmatprep.subr.mxu0 0.0
        %250 = vmatpush1.msra.mxu0 0.0
        %251 = vmatprep.subr.mxu0 0.0
        %252 = vmatpush1.msra.mxu0 0.0
        %253 = vmatprep.subr.mxu0 0.0
        %254 = vmatpush1.msra.mxu0 0.0
        %255 = vmatprep.subr.mxu0 0.0
        %256 = vmatpush1.msra.mxu0 0.0
        %257 = vmatprep.subr.mxu0 0.0
        %258 = vmatpush1.msra.mxu0 0.0
        %259 = vmatprep.subr.mxu0 0.0
        %260 = vmatpush1.msra.mxu0 0.0
        %261 = vmatprep.subr.mxu0 0.0
        %262 = vmatpush1.msra.mxu0 0.0
        %263 = vmatprep.subr.mxu0 0.0
        %264 = vmatpush1.msra.mxu0 0.0
        %265 = vmatprep.subr.mxu0 0.0
        %266 = vmatpush1.msra.mxu0 0.0
        %267 = vmatprep.subr.mxu0 0.0
        %268 = vmatpush1.msra.mxu0 0.0
        %269 = vmatprep.subr.mxu0 0.0
        %270 = vmatpush1.msra.mxu0 0.0
        %271 = vmatprep.subr.mxu0 0.0
        %272 = vmatpush1.msra.mxu0 0.0
        %273 = vmatprep.subr.mxu0 0.0
        %274 = vmatpush1.msra.mxu0 0.0
        %275 = vmatprep.subr.mxu0 0.0
        %276 = vmatpush1.msra.mxu0 0.0
        %277 = vmatprep.subr.mxu0 0.0
        %278 = vmatpush1.msra.mxu0 0.0
        %279 = vmatprep.subr.mxu0 0.0
        %280 = vmatpush1.msra.mxu0 0.0
        %281 = vmatprep.subr.mxu0 0.0
        %282 = vmatpush1.msra.mxu0 0.0
        %283 = vmatprep.subr.mxu0 0.0
        %284 = vmatpush1.msra.mxu0 0.0
        %285 = vmatprep.subr.mxu0 0.0
        %286 = vmatpush1.msra.mxu0 0.0
        %287 = vmatprep.subr.mxu0 0.0
        %288 = vmatpush1.msra.mxu0 0.0
        %289 = vmatprep.subr.mxu0 0.0
        %290 = vmatpush1.msra.mxu0 0.0
        %291 = vmatprep.subr.mxu0 0.0
        %292 = vmatpush1.msra.mxu0 0.0
        %293 = vmatprep.subr.mxu0 0.0
        %294 = vmatpush1.msra.mxu0 0.0
        %295 = vmatprep.subr.mxu0 0.0
        %296 = vmatpush1.msra.mxu0 0.0
        %297 = vmatprep.mubr.f32.mxu0 0.0
        %298 = vmatmul.mubr.f32.gmra.mrb[0].mxu0 %v228
        %v299 = vpop.f32.mrb[0].mxu0
        %v300 = vadd.f32 0.0, %v299
        %v301 = vpop.f32.mrb[0].mxu0
        %302 = vmatprep.mubr.f32.mxu0 0.0
        %303 = vmatmul.mubr.f32.gmra.mrb[0].mxu0 %v231
        %v304 = vpop.f32.mrb[0].mxu0
        %v305 = vadd.f32 0.0, %v304
        %v306 = vpop.f32.mrb[0].mxu0
        %307 = vdwg.mxu0
        %v308 = vld [vmem:[%s2] sm:$0xf]
        %309 = vmatprep.subr.mxu0 0.0
        %310 = vmatpush1.xpose.msra.mxu0 %v300
        %311 = vmatprep.subr.mxu0 0.0
        %312 = vmatpush1.xpose.msra.mxu0 %v305
        %313 = vmatprep.subr.mxu0 0.0
        %314 = vmatpush1.xpose.msra.mxu0 0.0
        %315 = vmatprep.subr.mxu0 0.0
        %316 = vmatpush1.xpose.msra.mxu0 0.0
        %317 = vmatprep.subr.mxu0 0.0
        %318 = vmatpush1.xpose.msra.mxu0 0.0
        %319 = vmatprep.subr.mxu0 0.0
        %320 = vmatpush1.xpose.msra.mxu0 0.0
        %321 = vmatprep.subr.mxu0 0.0
        %322 = vmatpush1.xpose.msra.mxu0 0.0
        %323 = vmatprep.subr.mxu0 0.0
        %324 = vmatpush1.xpose.msra.mxu0 0.0
        %325 = vmatprep.subr.mxu0 0.0
        %326 = vmatpush1.xpose.msra.mxu0 0.0
        %327 = vmatprep.subr.mxu0 0.0
        %328 = vmatpush1.xpose.msra.mxu0 0.0
        %329 = vmatprep.subr.mxu0 0.0
        %330 = vmatpush1.xpose.msra.mxu0 0.0
        %331 = vmatprep.subr.mxu0 0.0
        %332 = vmatpush1.xpose.msra.mxu0 0.0
        %333 = vmatprep.subr.mxu0 0.0
        %334 = vmatpush1.xpose.msra.mxu0 0.0
        %335 = vmatprep.subr.mxu0 0.0
        %336 = vmatpush1.xpose.msra.mxu0 0.0
        %337 = vmatprep.subr.mxu0 0.0
        %338 = vmatpush1.xpose.msra.mxu0 0.0
        %339 = vmatprep.subr.mxu0 0.0
        %340 = vmatpush1.xpose.msra.mxu0 0.0
        %341 = vmatprep.subr.mxu0 0.0
        %342 = vmatpush1.xpose.msra.mxu0 0.0
        %343 = vmatprep.subr.mxu0 0.0
        %344 = vmatpush1.xpose.msra.mxu0 0.0
        %345 = vmatprep.subr.mxu0 0.0
        %346 = vmatpush1.xpose.msra.mxu0 0.0
        %347 = vmatprep.subr.mxu0 0.0
        %348 = vmatpush1.xpose.msra.mxu0 0.0
        %349 = vmatprep.subr.mxu0 0.0
        %350 = vmatpush1.xpose.msra.mxu0 0.0
        %351 = vmatprep.subr.mxu0 0.0
        %352 = vmatpush1.xpose.msra.mxu0 0.0
        %353 = vmatprep.subr.mxu0 0.0
        %354 = vmatpush1.xpose.msra.mxu0 0.0
        %355 = vmatprep.subr.mxu0 0.0
        %356 = vmatpush1.xpose.msra.mxu0 0.0
        %357 = vmatprep.subr.mxu0 0.0
        %358 = vmatpush1.xpose.msra.mxu0 0.0
        %359 = vmatprep.subr.mxu0 0.0
        %360 = vmatpush1.xpose.msra.mxu0 0.0
        %361 = vmatprep.subr.mxu0 0.0
        %362 = vmatpush1.xpose.msra.mxu0 0.0
        %363 = vmatprep.subr.mxu0 0.0
        %364 = vmatpush1.xpose.msra.mxu0 0.0
        %365 = vmatprep.subr.mxu0 0.0
        %366 = vmatpush1.xpose.msra.mxu0 0.0
        %367 = vmatprep.subr.mxu0 0.0
        %368 = vmatpush1.xpose.msra.mxu0 0.0
        %369 = vmatprep.subr.mxu0 0.0
        %370 = vmatpush1.xpose.msra.mxu0 0.0
        %371 = vmatprep.subr.mxu0 0.0
        %372 = vmatpush1.xpose.msra.mxu0 0.0
        %373 = vmatprep.mubr.f32.mxu0 0.0
        %374 = vmatmul.mubr.f32.gmra.mrb[0].mxu0 %v308
        %v375 = vpop.f32.mrb[0].mxu0
        %v376 = vadd.f32 0.0, %v375
        %v377 = vpop.f32.mrb[0].mxu0
        %378 = vdwg.mxu0
        %v379 = vld [vmem:[%s3] sm:$0xff]
        %v380 = vld [vmem:[%s3 + $0x8] sm:$0xff]
        %v381 = vld [vmem:[%s3 + $0x10] sm:$0xff]
        %v382 = vld [vmem:[%s3 + $0x18] sm:$0xff]
        %v383 = vld [vmem:[%s3 + $0x20] sm:$0xff]
        %v384 = vld [vmem:[%s3 + $0x28] sm:$0xff]
        %v385 = vld [vmem:[%s3 + $0x30] sm:$0xff]
        %v386 = vld [vmem:[%s3 + $0x38] sm:$0xff]
        %v387 = vld [vmem:[%s3 + $0x40] sm:$0xff]
        %v388 = vld [vmem:[%s3 + $0x48] sm:$0xff]
        %v389 = vld [vmem:[%s3 + $0x50] sm:$0xff]
        %v390 = vld [vmem:[%s3 + $0x58] sm:$0xff]
        %v391 = vld [vmem:[%s3 + $0x60] sm:$0xff]
        %v392 = vld [vmem:[%s3 + $0x68] sm:$0xff]
        %v393 = vld [vmem:[%s3 + $0x70] sm:$0xff]
        %v394 = vld [vmem:[%s3 + $0x78] sm:$0xff]
        %395 = vmatprep.subr.mxu0 0.0
        %396 = vmatpush1.msra.mxu0 %v379
        %397 = vmatprep.subr.mxu0 0.0
        %398 = vmatpush1.msra.mxu0 %v380
        %399 = vmatprep.subr.mxu0 0.0
        %400 = vmatpush1.msra.mxu0 %v381
        %401 = vmatprep.subr.mxu0 0.0
        %402 = vmatpush1.msra.mxu0 %v382
        %403 = vmatprep.subr.mxu0 0.0
        %404 = vmatpush1.msra.mxu0 %v383
        %405 = vmatprep.subr.mxu0 0.0
        %406 = vmatpush1.msra.mxu0 %v384
        %407 = vmatprep.subr.mxu0 0.0
        %408 = vmatpush1.msra.mxu0 %v385
        %409 = vmatprep.subr.mxu0 0.0
        %410 = vmatpush1.msra.mxu0 %v386
        %411 = vmatprep.subr.mxu0 0.0
        %412 = vmatpush1.msra.mxu0 %v387
        %413 = vmatprep.subr.mxu0 0.0
        %414 = vmatpush1.msra.mxu0 %v388
        %415 = vmatprep.subr.mxu0 0.0
        %416 = vmatpush1.msra.mxu0 %v389
        %417 = vmatprep.subr.mxu0 0.0
        %418 = vmatpush1.msra.mxu0 %v390
        %419 = vmatprep.subr.mxu0 0.0
        %420 = vmatpush1.msra.mxu0 %v391
        %421 = vmatprep.subr.mxu0 0.0
        %422 = vmatpush1.msra.mxu0 %v392
        %423 = vmatprep.subr.mxu0 0.0
        %424 = vmatpush1.msra.mxu0 %v393
        %425 = vmatprep.subr.mxu0 0.0
        %426 = vmatpush1.msra.mxu0 %v394
        %427 = vmatprep.subr.mxu0 0.0
        %428 = vmatpush1.msra.mxu0 0.0
        %429 = vmatprep.subr.mxu0 0.0
        %430 = vmatpush1.msra.mxu0 0.0
        %431 = vmatprep.subr.mxu0 0.0
        %432 = vmatpush1.msra.mxu0 0.0
        %433 = vmatprep.subr.mxu0 0.0
        %434 = vmatpush1.msra.mxu0 0.0
        %435 = vmatprep.subr.mxu0 0.0
        %436 = vmatpush1.msra.mxu0 0.0
        %437 = vmatprep.subr.mxu0 0.0
        %438 = vmatpush1.msra.mxu0 0.0
        %439 = vmatprep.subr.mxu0 0.0
        %440 = vmatpush1.msra.mxu0 0.0
        %441 = vmatprep.subr.mxu0 0.0
        %442 = vmatpush1.msra.mxu0 0.0
        %443 = vmatprep.subr.mxu0 0.0
        %444 = vmatpush1.msra.mxu0 0.0
        %445 = vmatprep.subr.mxu0 0.0
        %446 = vmatpush1.msra.mxu0 0.0
        %447 = vmatprep.subr.mxu0 0.0
        %448 = vmatpush1.msra.mxu0 0.0
        %449 = vmatprep.subr.mxu0 0.0
        %450 = vmatpush1.msra.mxu0 0.0
        %451 = vmatprep.subr.mxu0 0.0
        %452 = vmatpush1.msra.mxu0 0.0
        %453 = vmatprep.subr.mxu0 0.0
        %454 = vmatpush1.msra.mxu0 0.0
        %455 = vmatprep.subr.mxu0 0.0
        %456 = vmatpush1.msra.mxu0 0.0
        %457 = vmatprep.subr.mxu0 0.0
        %458 = vmatpush1.msra.mxu0 0.0
        %459 = vmatprep.mubr.f32.mxu0 0.0
        %460 = vmatmul.mubr.f32.gmra.mrb[0].mxu0 %v300
        %v461 = vpop.f32.mrb[0].mxu0
        %v462 = vadd.f32 0.0, %v461
        %v463 = vpop.f32.mrb[0].mxu0
        %464 = vmatprep.mubr.f32.mxu0 0.0
        %465 = vmatmul.mubr.f32.gmra.mrb[0].mxu0 %v305
        %v466 = vpop.f32.mrb[0].mxu0
        %v467 = vadd.f32 0.0, %v466
        %v468 = vpop.f32.mrb[0].mxu0
        %469 = vdwg.mxu0
        %v470 = vld [vmem:[%s4] sm:$0xff]
        %v471 = vld [vmem:[%s4 + $0x8] sm:$0xff]
        %vm472 = vcmp.gt.f32.partialorder %v470, 0.0
        %vm473 = vcmp.gt.f32.partialorder %v471, 0.0
        %v474 = vsel %vm472, 0.0, -1e+30
        %v475 = vsel %vm473, 0.0, -1e+30
        %477 = vset.pattern.permute.xlu0 0
        %478 = vperm.xlu0 %477, %v462
        %v479 = vpop.permute.xlu0 %478
        %482 = vset.pattern.permute.xlu0 0
        %483 = vperm.xlu0 %482, %v467
        %v484 = vpop.permute.xlu0 %483
        %v486 = vlaneseq
        %v487 = vshrl.u32 %v486, 7
        %v488 = vsub.s32 0, %v487
        %v489 = vrot.slane %v376, %v488
        %v490 = vadd.f32 %v479, %v489
        %v491 = vadd.f32 %v484, %v489
        %vm492 = vcmp.ge.f32.partialorder %v490, 0.0
        %vm493 = vcmp.ge.f32.partialorder %v491, 0.0
        %v494 = vmul.f32 %v490, 0.2
        %v495 = vmul.f32 %v491, 0.2
        %v496 = vsel %vm492, %v490, %v494
        %v497 = vsel %vm493, %v491, %v495
        %v498 = vadd.f32 %v496, %v474
        %v499 = vadd.f32 %v497, %v475
        %vm500 = vcmask 130048
        %v501 = vsel %vm500, %v498, -inf
        %502 = vmax.xlane.f32.xlu0 %v501
        %v503 = vpop.xlane.xlu0 %502
        %v504 = vsel %vm500, %v499, -inf
        %505 = vmax.xlane.f32.xlu0 %v504
        %v506 = vpop.xlane.xlu0 %505
        %v507 = vsub.f32 %v498, %v503
        %v508 = vsub.f32 %v499, %v506
        %v509 = vmul.f32 %v507, 1.442695
        %v510 = vpow.pop %v509
        %v511 = vmul.f32 %v508, 1.442695
        %v512 = vpow.pop %v511
        %v513 = vsel %vm472, %v510, 0.0
        %v514 = vsel %vm473, %v512, 0.0
        %v515 = vsel %vm500, %v513, 0.0
        %516 = vadd.xlane.f32.xlu0 %v515
        %v517 = vpop.xlane.xlu0 %516
        %v518 = vsel %vm500, %v514, 0.0
        %519 = vadd.xlane.f32.xlu0 %v518
        %v520 = vpop.xlane.xlu0 %519
        %vm521 = vcmp.eq.f32.partialorder %v517, 0.0
        %vm522 = vcmp.eq.f32.partialorder %v520, 0.0
        %v523 = vsel %vm521, 1.0, %v517
        %v524 = vsel %vm522, 1.0, %v520
        %v525 = vrcp.pop %v523
        %v526 = vrcp.pop %v524
        %v527 = vmul.f32 %v513, %v525
        %v528 = vmul.f32 %v514, %v526
        %v530 = vsel %vm500, %v527, 0
        %v533 = vsel %vm500, %v528, 0
        %535 = vmatprep.subr.mxu0 0.0
        %536 = vmatpush1.msra.mxu0 %v300
        %537 = vmatprep.subr.mxu0 0.0
        %538 = vmatpush1.msra.mxu0 %v305
        %539 = vmatprep.subr.mxu0 0.0
        %540 = vmatpush1.msra.mxu0 0.0
        %541 = vmatprep.subr.mxu0 0.0
        %542 = vmatpush1.msra.mxu0 0.0
        %543 = vmatprep.subr.mxu0 0.0
        %544 = vmatpush1.msra.mxu0 0.0
        %545 = vmatprep.subr.mxu0 0.0
        %546 = vmatpush1.msra.mxu0 0.0
        %547 = vmatprep.subr.mxu0 0.0
        %548 = vmatpush1.msra.mxu0 0.0
        %549 = vmatprep.subr.mxu0 0.0
        %550 = vmatpush1.msra.mxu0 0.0
        %551 = vmatprep.subr.mxu0 0.0
        %552 = vmatpush1.msra.mxu0 0.0
        %553 = vmatprep.subr.mxu0 0.0
        %554 = vmatpush1.msra.mxu0 0.0
        %555 = vmatprep.subr.mxu0 0.0
        %556 = vmatpush1.msra.mxu0 0.0
        %557 = vmatprep.subr.mxu0 0.0
        %558 = vmatpush1.msra.mxu0 0.0
        %559 = vmatprep.subr.mxu0 0.0
        %560 = vmatpush1.msra.mxu0 0.0
        %561 = vmatprep.subr.mxu0 0.0
        %562 = vmatpush1.msra.mxu0 0.0
        %563 = vmatprep.subr.mxu0 0.0
        %564 = vmatpush1.msra.mxu0 0.0
        %565 = vmatprep.subr.mxu0 0.0
        %566 = vmatpush1.msra.mxu0 0.0
        %567 = vmatprep.subr.mxu0 0.0
        %568 = vmatpush1.msra.mxu0 0.0
        %569 = vmatprep.subr.mxu0 0.0
        %570 = vmatpush1.msra.mxu0 0.0
        %571 = vmatprep.subr.mxu0 0.0
        %572 = vmatpush1.msra.mxu0 0.0
        %573 = vmatprep.subr.mxu0 0.0
        %574 = vmatpush1.msra.mxu0 0.0
        %575 = vmatprep.subr.mxu0 0.0
        %576 = vmatpush1.msra.mxu0 0.0
        %577 = vmatprep.subr.mxu0 0.0
        %578 = vmatpush1.msra.mxu0 0.0
        %579 = vmatprep.subr.mxu0 0.0
        %580 = vmatpush1.msra.mxu0 0.0
        %581 = vmatprep.subr.mxu0 0.0
        %582 = vmatpush1.msra.mxu0 0.0
        %583 = vmatprep.subr.mxu0 0.0
        %584 = vmatpush1.msra.mxu0 0.0
        %585 = vmatprep.subr.mxu0 0.0
        %586 = vmatpush1.msra.mxu0 0.0
        %587 = vmatprep.subr.mxu0 0.0
        %588 = vmatpush1.msra.mxu0 0.0
        %589 = vmatprep.subr.mxu0 0.0
        %590 = vmatpush1.msra.mxu0 0.0
        %591 = vmatprep.subr.mxu0 0.0
        %592 = vmatpush1.msra.mxu0 0.0
        %593 = vmatprep.subr.mxu0 0.0
        %594 = vmatpush1.msra.mxu0 0.0
        %595 = vmatprep.subr.mxu0 0.0
        %596 = vmatpush1.msra.mxu0 0.0
        %597 = vmatprep.subr.mxu0 0.0
        %598 = vmatpush1.msra.mxu0 0.0
        %599 = vmatprep.mubr.f32.mxu0 0.0
        %600 = vmatmul.mubr.f32.gmra.mrb[0].mxu0 %v530
        %v601 = vpop.f32.mrb[0].mxu0
        %v602 = vadd.f32 0.0, %v601
        %v603 = vpop.f32.mrb[0].mxu0
        %604 = vmatprep.mubr.f32.mxu0 0.0
        %605 = vmatmul.mubr.f32.gmra.mrb[0].mxu0 %v533
        %v606 = vpop.f32.mrb[0].mxu0
        %v607 = vadd.f32 0.0, %v606
        %v608 = vpop.f32.mrb[0].mxu0
        %609 = vdwg.mxu0
        %610 = vset.pattern.permute.xlu0 1
        %611 = vperm.xlu0 %610, %v462
        %v612 = vpop.permute.xlu0 %611
        %614 = vset.pattern.permute.xlu0 1
        %615 = vperm.xlu0 %614, %v467
        %v616 = vpop.permute.xlu0 %615
        %v618 = vlaneseq
        %v619 = vshrl.u32 %v618, 7
        %v620 = vsub.s32 1, %v619
        %v621 = vrot.slane %v376, %v620
        %v622 = vadd.f32 %v612, %v621
        %v623 = vadd.f32 %v616, %v621
        %vm624 = vcmp.ge.f32.partialorder %v622, 0.0
        %vm625 = vcmp.ge.f32.partialorder %v623, 0.0
        %v626 = vmul.f32 %v622, 0.2
        %v627 = vmul.f32 %v623, 0.2
        %v628 = vsel %vm624, %v622, %v626
        %v629 = vsel %vm625, %v623, %v627
        %v630 = vadd.f32 %v628, %v474
        %v631 = vadd.f32 %v629, %v475
        %v632 = vsel %vm500, %v630, -inf
        %633 = vmax.xlane.f32.xlu0 %v632
        %v634 = vpop.xlane.xlu0 %633
        %v635 = vsel %vm500, %v631, -inf
        %636 = vmax.xlane.f32.xlu0 %v635
        %v637 = vpop.xlane.xlu0 %636
        %v638 = vsub.f32 %v630, %v634
        %v639 = vsub.f32 %v631, %v637
        %v640 = vmul.f32 %v638, 1.442695
        %v641 = vpow.pop %v640
        %v642 = vmul.f32 %v639, 1.442695
        %v643 = vpow.pop %v642
        %v644 = vsel %vm472, %v641, 0.0
        %v645 = vsel %vm473, %v643, 0.0
        %v646 = vsel %vm500, %v644, 0.0
        %647 = vadd.xlane.f32.xlu0 %v646
        %v648 = vpop.xlane.xlu0 %647
        %v649 = vsel %vm500, %v645, 0.0
        %650 = vadd.xlane.f32.xlu0 %v649
        %v651 = vpop.xlane.xlu0 %650
        %vm652 = vcmp.eq.f32.partialorder %v648, 0.0
        %vm653 = vcmp.eq.f32.partialorder %v651, 0.0
        %v654 = vsel %vm652, 1.0, %v648
        %v655 = vsel %vm653, 1.0, %v651
        %v656 = vrcp.pop %v654
        %v657 = vrcp.pop %v655
        %v658 = vmul.f32 %v644, %v656
        %v659 = vmul.f32 %v645, %v657
        %662 = vrot.lane.b32.xlu0 %v300, 96
        %v663 = vpop.permute.xlu0 %662
        %664 = vrot.lane.b32.xlu0 %v305, 96
        %v665 = vpop.permute.xlu0 %664
        %v669 = vsel %vm500, %v658, 0
        %v672 = vsel %vm500, %v659, 0
        %674 = vmatprep.subr.mxu0 0.0
        %675 = vmatpush1.msra.mxu0 %v663
        %676 = vmatprep.subr.mxu0 0.0
        %677 = vmatpush1.msra.mxu0 %v665
        %678 = vmatprep.subr.mxu0 0.0
        %679 = vmatpush1.msra.mxu0 0.0
        %680 = vmatprep.subr.mxu0 0.0
        %681 = vmatpush1.msra.mxu0 0.0
        %682 = vmatprep.subr.mxu0 0.0
        %683 = vmatpush1.msra.mxu0 0.0
        %684 = vmatprep.subr.mxu0 0.0
        %685 = vmatpush1.msra.mxu0 0.0
        %686 = vmatprep.subr.mxu0 0.0
        %687 = vmatpush1.msra.mxu0 0.0
        %688 = vmatprep.subr.mxu0 0.0
        %689 = vmatpush1.msra.mxu0 0.0
        %690 = vmatprep.subr.mxu0 0.0
        %691 = vmatpush1.msra.mxu0 0.0
        %692 = vmatprep.subr.mxu0 0.0
        %693 = vmatpush1.msra.mxu0 0.0
        %694 = vmatprep.subr.mxu0 0.0
        %695 = vmatpush1.msra.mxu0 0.0
        %696 = vmatprep.subr.mxu0 0.0
        %697 = vmatpush1.msra.mxu0 0.0
        %698 = vmatprep.subr.mxu0 0.0
        %699 = vmatpush1.msra.mxu0 0.0
        %700 = vmatprep.subr.mxu0 0.0
        %701 = vmatpush1.msra.mxu0 0.0
        %702 = vmatprep.subr.mxu0 0.0
        %703 = vmatpush1.msra.mxu0 0.0
        %704 = vmatprep.subr.mxu0 0.0
        %705 = vmatpush1.msra.mxu0 0.0
        %706 = vmatprep.subr.mxu0 0.0
        %707 = vmatpush1.msra.mxu0 0.0
        %708 = vmatprep.subr.mxu0 0.0
        %709 = vmatpush1.msra.mxu0 0.0
        %710 = vmatprep.subr.mxu0 0.0
        %711 = vmatpush1.msra.mxu0 0.0
        %712 = vmatprep.subr.mxu0 0.0
        %713 = vmatpush1.msra.mxu0 0.0
        %714 = vmatprep.subr.mxu0 0.0
        %715 = vmatpush1.msra.mxu0 0.0
        %716 = vmatprep.subr.mxu0 0.0
        %717 = vmatpush1.msra.mxu0 0.0
        %718 = vmatprep.subr.mxu0 0.0
        %719 = vmatpush1.msra.mxu0 0.0
        %720 = vmatprep.subr.mxu0 0.0
        %721 = vmatpush1.msra.mxu0 0.0
        %722 = vmatprep.subr.mxu0 0.0
        %723 = vmatpush1.msra.mxu0 0.0
        %724 = vmatprep.subr.mxu0 0.0
        %725 = vmatpush1.msra.mxu0 0.0
        %726 = vmatprep.subr.mxu0 0.0
        %727 = vmatpush1.msra.mxu0 0.0
        %728 = vmatprep.subr.mxu0 0.0
        %729 = vmatpush1.msra.mxu0 0.0
        %730 = vmatprep.subr.mxu0 0.0
        %731 = vmatpush1.msra.mxu0 0.0
        %732 = vmatprep.subr.mxu0 0.0
        %733 = vmatpush1.msra.mxu0 0.0
        %734 = vmatprep.subr.mxu0 0.0
        %735 = vmatpush1.msra.mxu0 0.0
        %736 = vmatprep.subr.mxu0 0.0
        %737 = vmatpush1.msra.mxu0 0.0
        %738 = vmatprep.mubr.f32.mxu0 0.0
        %739 = vmatmul.mubr.f32.gmra.mrb[0].mxu0 %v669
        %v740 = vpop.f32.mrb[0].mxu0
        %v741 = vadd.f32 0.0, %v740
        %v742 = vpop.f32.mrb[0].mxu0
        %743 = vmatprep.mubr.f32.mxu0 0.0
        %744 = vmatmul.mubr.f32.gmra.mrb[0].mxu0 %v672
        %v745 = vpop.f32.mrb[0].mxu0
        %v746 = vadd.f32 0.0, %v745
        %v747 = vpop.f32.mrb[0].mxu0
        %748 = vdwg.mxu0
        %749 = vset.pattern.permute.xlu0 2
        %750 = vperm.xlu0 %749, %v462
        %v751 = vpop.permute.xlu0 %750
        %753 = vset.pattern.permute.xlu0 2
        %754 = vperm.xlu0 %753, %v467
        %v755 = vpop.permute.xlu0 %754
        %v757 = vlaneseq
        %v758 = vshrl.u32 %v757, 7
        %v759 = vsub.s32 2, %v758
        %v760 = vrot.slane %v376, %v759
        %v761 = vadd.f32 %v751, %v760
        %v762 = vadd.f32 %v755, %v760
        %vm763 = vcmp.ge.f32.partialorder %v761, 0.0
        %vm764 = vcmp.ge.f32.partialorder %v762, 0.0
        %v765 = vmul.f32 %v761, 0.2
        %v766 = vmul.f32 %v762, 0.2
        %v767 = vsel %vm763, %v761, %v765
        %v768 = vsel %vm764, %v762, %v766
        %v769 = vadd.f32 %v767, %v474
        %v770 = vadd.f32 %v768, %v475
        %v771 = vsel %vm500, %v769, -inf
        %772 = vmax.xlane.f32.xlu0 %v771
        %v773 = vpop.xlane.xlu0 %772
        %v774 = vsel %vm500, %v770, -inf
        %775 = vmax.xlane.f32.xlu0 %v774
        %v776 = vpop.xlane.xlu0 %775
        %v777 = vsub.f32 %v769, %v773
        %v778 = vsub.f32 %v770, %v776
        %v779 = vmul.f32 %v777, 1.442695
        %v780 = vpow.pop %v779
        %v781 = vmul.f32 %v778, 1.442695
        %v782 = vpow.pop %v781
        %v783 = vsel %vm472, %v780, 0.0
        %v784 = vsel %vm473, %v782, 0.0
        %v785 = vsel %vm500, %v783, 0.0
        %786 = vadd.xlane.f32.xlu0 %v785
        %v787 = vpop.xlane.xlu0 %786
        %v788 = vsel %vm500, %v784, 0.0
        %789 = vadd.xlane.f32.xlu0 %v788
        %v790 = vpop.xlane.xlu0 %789
        %vm791 = vcmp.eq.f32.partialorder %v787, 0.0
        %vm792 = vcmp.eq.f32.partialorder %v790, 0.0
        %v793 = vsel %vm791, 1.0, %v787
        %v794 = vsel %vm792, 1.0, %v790
        %v795 = vrcp.pop %v793
        %v796 = vrcp.pop %v794
        %v797 = vmul.f32 %v783, %v795
        %v798 = vmul.f32 %v784, %v796
        %799 = vrot.lane.b32.xlu0 %v300, 64
        %v800 = vpop.permute.xlu0 %799
        %801 = vrot.lane.b32.xlu0 %v305, 64
        %v802 = vpop.permute.xlu0 %801
        %v806 = vsel %vm500, %v797, 0
        %v809 = vsel %vm500, %v798, 0
        %811 = vmatprep.subr.mxu0 0.0
        %812 = vmatpush1.msra.mxu0 %v800
        %813 = vmatprep.subr.mxu0 0.0
        %814 = vmatpush1.msra.mxu0 %v802
        %815 = vmatprep.subr.mxu0 0.0
        %816 = vmatpush1.msra.mxu0 0.0
        %817 = vmatprep.subr.mxu0 0.0
        %818 = vmatpush1.msra.mxu0 0.0
        %819 = vmatprep.subr.mxu0 0.0
        %820 = vmatpush1.msra.mxu0 0.0
        %821 = vmatprep.subr.mxu0 0.0
        %822 = vmatpush1.msra.mxu0 0.0
        %823 = vmatprep.subr.mxu0 0.0
        %824 = vmatpush1.msra.mxu0 0.0
        %825 = vmatprep.subr.mxu0 0.0
        %826 = vmatpush1.msra.mxu0 0.0
        %827 = vmatprep.subr.mxu0 0.0
        %828 = vmatpush1.msra.mxu0 0.0
        %829 = vmatprep.subr.mxu0 0.0
        %830 = vmatpush1.msra.mxu0 0.0
        %831 = vmatprep.subr.mxu0 0.0
        %832 = vmatpush1.msra.mxu0 0.0
        %833 = vmatprep.subr.mxu0 0.0
        %834 = vmatpush1.msra.mxu0 0.0
        %835 = vmatprep.subr.mxu0 0.0
        %836 = vmatpush1.msra.mxu0 0.0
        %837 = vmatprep.subr.mxu0 0.0
        %838 = vmatpush1.msra.mxu0 0.0
        %839 = vmatprep.subr.mxu0 0.0
        %840 = vmatpush1.msra.mxu0 0.0
        %841 = vmatprep.subr.mxu0 0.0
        %842 = vmatpush1.msra.mxu0 0.0
        %843 = vmatprep.subr.mxu0 0.0
        %844 = vmatpush1.msra.mxu0 0.0
        %845 = vmatprep.subr.mxu0 0.0
        %846 = vmatpush1.msra.mxu0 0.0
        %847 = vmatprep.subr.mxu0 0.0
        %848 = vmatpush1.msra.mxu0 0.0
        %849 = vmatprep.subr.mxu0 0.0
        %850 = vmatpush1.msra.mxu0 0.0
        %851 = vmatprep.subr.mxu0 0.0
        %852 = vmatpush1.msra.mxu0 0.0
        %853 = vmatprep.subr.mxu0 0.0
        %854 = vmatpush1.msra.mxu0 0.0
        %855 = vmatprep.subr.mxu0 0.0
        %856 = vmatpush1.msra.mxu0 0.0
        %857 = vmatprep.subr.mxu0 0.0
        %858 = vmatpush1.msra.mxu0 0.0
        %859 = vmatprep.subr.mxu0 0.0
        %860 = vmatpush1.msra.mxu0 0.0
        %861 = vmatprep.subr.mxu0 0.0
        %862 = vmatpush1.msra.mxu0 0.0
        %863 = vmatprep.subr.mxu0 0.0
        %864 = vmatpush1.msra.mxu0 0.0
        %865 = vmatprep.subr.mxu0 0.0
        %866 = vmatpush1.msra.mxu0 0.0
        %867 = vmatprep.subr.mxu0 0.0
        %868 = vmatpush1.msra.mxu0 0.0
        %869 = vmatprep.subr.mxu0 0.0
        %870 = vmatpush1.msra.mxu0 0.0
        %871 = vmatprep.subr.mxu0 0.0
        %872 = vmatpush1.msra.mxu0 0.0
        %873 = vmatprep.subr.mxu0 0.0
        %874 = vmatpush1.msra.mxu0 0.0
        %875 = vmatprep.mubr.f32.mxu0 0.0
        %876 = vmatmul.mubr.f32.gmra.mrb[0].mxu0 %v806
        %v877 = vpop.f32.mrb[0].mxu0
        %v878 = vadd.f32 0.0, %v877
        %v879 = vpop.f32.mrb[0].mxu0
        %880 = vmatprep.mubr.f32.mxu0 0.0
        %881 = vmatmul.mubr.f32.gmra.mrb[0].mxu0 %v809
        %v882 = vpop.f32.mrb[0].mxu0
        %v883 = vadd.f32 0.0, %v882
        %v884 = vpop.f32.mrb[0].mxu0
        %885 = vdwg.mxu0
        %886 = vset.pattern.permute.xlu0 3
        %887 = vperm.xlu0 %886, %v462
        %v888 = vpop.permute.xlu0 %887
        %890 = vset.pattern.permute.xlu0 3
        %891 = vperm.xlu0 %890, %v467
        %v892 = vpop.permute.xlu0 %891
        %v894 = vlaneseq
        %v895 = vshrl.u32 %v894, 7
        %v896 = vsub.s32 3, %v895
        %v897 = vrot.slane %v376, %v896
        %v898 = vadd.f32 %v888, %v897
        %v899 = vadd.f32 %v892, %v897
        %vm900 = vcmp.ge.f32.partialorder %v898, 0.0
        %vm901 = vcmp.ge.f32.partialorder %v899, 0.0
        %v902 = vmul.f32 %v898, 0.2
        %v903 = vmul.f32 %v899, 0.2
        %v904 = vsel %vm900, %v898, %v902
        %v905 = vsel %vm901, %v899, %v903
        %v906 = vadd.f32 %v904, %v474
        %v907 = vadd.f32 %v905, %v475
        %v908 = vsel %vm500, %v906, -inf
        %909 = vmax.xlane.f32.xlu0 %v908
        %v910 = vpop.xlane.xlu0 %909
        %v911 = vsel %vm500, %v907, -inf
        %912 = vmax.xlane.f32.xlu0 %v911
        %v913 = vpop.xlane.xlu0 %912
        %v914 = vsub.f32 %v906, %v910
        %v915 = vsub.f32 %v907, %v913
        %v916 = vmul.f32 %v914, 1.442695
        %v917 = vpow.pop %v916
        %v918 = vmul.f32 %v915, 1.442695
        %v919 = vpow.pop %v918
        %v920 = vsel %vm472, %v917, 0.0
        %v921 = vsel %vm473, %v919, 0.0
        %v922 = vsel %vm500, %v920, 0.0
        %923 = vadd.xlane.f32.xlu0 %v922
        %v924 = vpop.xlane.xlu0 %923
        %v925 = vsel %vm500, %v921, 0.0
        %926 = vadd.xlane.f32.xlu0 %v925
        %v927 = vpop.xlane.xlu0 %926
        %vm928 = vcmp.eq.f32.partialorder %v924, 0.0
        %vm929 = vcmp.eq.f32.partialorder %v927, 0.0
        %v930 = vsel %vm928, 1.0, %v924
        %v931 = vsel %vm929, 1.0, %v927
        %v932 = vrcp.pop %v930
        %v933 = vrcp.pop %v931
        %v934 = vmul.f32 %v920, %v932
        %v935 = vmul.f32 %v921, %v933
        %936 = vrot.lane.b32.xlu0 %v300, 32
        %v937 = vpop.permute.xlu0 %936
        %938 = vrot.lane.b32.xlu0 %v305, 32
        %v939 = vpop.permute.xlu0 %938
        %v943 = vsel %vm500, %v934, 0
        %v946 = vsel %vm500, %v935, 0
        %948 = vmatprep.subr.mxu0 0.0
        %949 = vmatpush1.msra.mxu0 %v937
        %950 = vmatprep.subr.mxu0 0.0
        %951 = vmatpush1.msra.mxu0 %v939
        %952 = vmatprep.subr.mxu0 0.0
        %953 = vmatpush1.msra.mxu0 0.0
        %954 = vmatprep.subr.mxu0 0.0
        %955 = vmatpush1.msra.mxu0 0.0
        %956 = vmatprep.subr.mxu0 0.0
        %957 = vmatpush1.msra.mxu0 0.0
        %958 = vmatprep.subr.mxu0 0.0
        %959 = vmatpush1.msra.mxu0 0.0
        %960 = vmatprep.subr.mxu0 0.0
        %961 = vmatpush1.msra.mxu0 0.0
        %962 = vmatprep.subr.mxu0 0.0
        %963 = vmatpush1.msra.mxu0 0.0
        %964 = vmatprep.subr.mxu0 0.0
        %965 = vmatpush1.msra.mxu0 0.0
        %966 = vmatprep.subr.mxu0 0.0
        %967 = vmatpush1.msra.mxu0 0.0
        %968 = vmatprep.subr.mxu0 0.0
        %969 = vmatpush1.msra.mxu0 0.0
        %970 = vmatprep.subr.mxu0 0.0
        %971 = vmatpush1.msra.mxu0 0.0
        %972 = vmatprep.subr.mxu0 0.0
        %973 = vmatpush1.msra.mxu0 0.0
        %974 = vmatprep.subr.mxu0 0.0
        %975 = vmatpush1.msra.mxu0 0.0
        %976 = vmatprep.subr.mxu0 0.0
        %977 = vmatpush1.msra.mxu0 0.0
        %978 = vmatprep.subr.mxu0 0.0
        %979 = vmatpush1.msra.mxu0 0.0
        %980 = vmatprep.subr.mxu0 0.0
        %981 = vmatpush1.msra.mxu0 0.0
        %982 = vmatprep.subr.mxu0 0.0
        %983 = vmatpush1.msra.mxu0 0.0
        %984 = vmatprep.subr.mxu0 0.0
        %985 = vmatpush1.msra.mxu0 0.0
        %986 = vmatprep.subr.mxu0 0.0
        %987 = vmatpush1.msra.mxu0 0.0
        %988 = vmatprep.subr.mxu0 0.0
        %989 = vmatpush1.msra.mxu0 0.0
        %990 = vmatprep.subr.mxu0 0.0
        %991 = vmatpush1.msra.mxu0 0.0
        %992 = vmatprep.subr.mxu0 0.0
        %993 = vmatpush1.msra.mxu0 0.0
        %994 = vmatprep.subr.mxu0 0.0
        %995 = vmatpush1.msra.mxu0 0.0
        %996 = vmatprep.subr.mxu0 0.0
        %997 = vmatpush1.msra.mxu0 0.0
        %998 = vmatprep.subr.mxu0 0.0
        %999 = vmatpush1.msra.mxu0 0.0
        %1000 = vmatprep.subr.mxu0 0.0
        %1001 = vmatpush1.msra.mxu0 0.0
        %1002 = vmatprep.subr.mxu0 0.0
        %1003 = vmatpush1.msra.mxu0 0.0
        %1004 = vmatprep.subr.mxu0 0.0
        %1005 = vmatpush1.msra.mxu0 0.0
        %1006 = vmatprep.subr.mxu0 0.0
        %1007 = vmatpush1.msra.mxu0 0.0
        %1008 = vmatprep.subr.mxu0 0.0
        %1009 = vmatpush1.msra.mxu0 0.0
        %1010 = vmatprep.subr.mxu0 0.0
        %1011 = vmatpush1.msra.mxu0 0.0
        %1012 = vmatprep.mubr.f32.mxu0 0.0
        %1013 = vmatmul.mubr.f32.gmra.mrb[0].mxu0 %v943
        %v1014 = vpop.f32.mrb[0].mxu0
        %v1015 = vadd.f32 0.0, %v1014
        %v1016 = vpop.f32.mrb[0].mxu0
        %1017 = vmatprep.mubr.f32.mxu0 0.0
        %1018 = vmatmul.mubr.f32.gmra.mrb[0].mxu0 %v946
        %v1019 = vpop.f32.mrb[0].mxu0
        %v1020 = vadd.f32 0.0, %v1019
        %v1021 = vpop.f32.mrb[0].mxu0
        %1022 = vdwg.mxu0
        %1025 = vrot.lane.b32.xlu0 %v741, 32
        %v1026 = vpop.permute.xlu0 %1025
        %1027 = vrot.lane.b32.xlu0 %v746, 32
        %v1028 = vpop.permute.xlu0 %1027
        %1033 = vrot.lane.b32.xlu0 %v878, 64
        %v1034 = vpop.permute.xlu0 %1033
        %1035 = vrot.lane.b32.xlu0 %v883, 64
        %v1036 = vpop.permute.xlu0 %1035
        %1041 = vrot.lane.b32.xlu0 %v1015, 96
        %v1042 = vpop.permute.xlu0 %1041
        %1043 = vrot.lane.b32.xlu0 %v1020, 96
        %v1044 = vpop.permute.xlu0 %1043
        %vm1047 = vcmask 261120
        %v1048 = vsel %vm1047, %v602, %v1026
        %v1049 = vsel %vm1047, %v607, %v1028
        %vm1050 = vcmask 523264
        %v1051 = vsel %vm1050, %v1048, %v1034
        %v1052 = vsel %vm1050, %v1049, %v1036
        %vm1053 = vcmask 785408
        %v1054 = vsel %vm1053, %v1051, %v1042
        %v1055 = vsel %vm1053, %v1052, %v1044
        %1056 = vst [vmem:[%s217] sm:$0xff] %v1054
        %1057 = vst [vmem:[%s217 + $0x8] sm:$0xff] %v1055
        %s1058 = sand.u32 %s137, 1
        %s1059 = scalar_lea.sflag [#allocation3], %s1058
        %s1060 = sand.u32 %s137, 1
        %s1061 = smul.addr %s1060, 16
        %s1062 = scalar_lea.vmem [#allocation2], %s1061
        // Predicated region
        $region41: #{tpu_custom_call.1} parent=39 // pred_check
          %p1063 = pneg %p147
        $region42: #{tpu_custom_call.1} parent=39 // pred_check_branch
          %1065 = sbr.rel (%p1063) target = $region44
        $region43: #{tpu_custom_call.1} parent=39 // pred_region
          %s1067 = ssub.s32 256, 256
          %1068 = vsyncadd %s1059, %s1067
          %s1069 = smul.addr %s19, 2
          %s1070 = smul.addr %s1069, 128
          %s1071 = scalar_lea.hbm %s5, %s1070
          %s1072 = sshll.u32 %s1062, 4
          %s1073 = int_to_ptr.vmem [resolvable:$true] %s1072
          %1078 = dma.vmem_to_hbm [thread:$0]  %s1073, 256, %s1071, %s1059, 128, 128, 8
        $region44: #{tpu_custom_call.1} parent=39 // pred_fallthru
          _
      $region40: #{tpu_custom_call.1} parent=5 // pred_fallthru
        _
      %p1079 = scmp.le.s32.totalorder 2, %s14
      // Predicated region
      $region45: #{tpu_custom_call.1} parent=5 // pred_check
        %p1080 = pneg %p1079
      $region46: #{tpu_custom_call.1} parent=5 // pred_check_branch
        %1082 = sbr.rel (%p1080) target = $region48
      $region47: #{tpu_custom_call.1} parent=5 // pred_region
        %s1083 = ssub.s32 %s14, 2
        // Predicated region
        $region49: #{tpu_custom_call.1} parent=47 // pred_check
          %p1084 = pneg %p153
        $region50: #{tpu_custom_call.1} parent=47 // pred_check_branch
          %1086 = sbr.rel (%p1084) target = $region52
        $region51: #{tpu_custom_call.1} parent=47 // pred_region
          %s1087 = sand.u32 %s138, 1
          %s1088 = scalar_lea.sflag [#allocation3], %s1087
          %s1089 = sand.u32 %s138, 1
          %s1090 = smul.addr %s1089, 16
          %s1091 = scalar_lea.vmem [#allocation2], %s1090
          %1092 = dma.done %s1088, 256
        $region52: #{tpu_custom_call.1} parent=47 // pred_fallthru
          _
      $region48: #{tpu_custom_call.1} parent=5 // pred_fallthru
        _
    $region6: #{tpu_custom_call.1} parent=1 // loop_footer
      %s18 = sadd.s32 1, %s14
    $region7: #{tpu_custom_call.1} parent=1 // loop_footer_branch
      %13 = sbr.rel target = $region3
    $region8: #{tpu_custom_call.1} parent=1 // loop_exit
      _
    %1093 = vsyncpa [#allocation3], 1
    %s1094 = scalar_lea.sflag [#allocation3], 1
    %1095 = vsyncpa %s1094, 1

</llo_original>
